<compile_context>
chip_gen: v7x
topology: tpu7x:2x2x1
jax: 0.10.0
libtpu: 0.0.40
codegen_flags: <defaults>
</compile_context>

<pallas_src>
import functools

import numpy as np
import jax
import jax.numpy as jnp
from jax.experimental import pallas as pl
from jax.experimental.pallas import tpu as pltpu

_LANE = 128
_SUBLANE = 8


def _round_up(x, m):
    return ((x + m - 1) // m) * m


def _mlp10_fused_kernel(x_ref, w_ref, b_ref, o_ref, *, act, dims, store):
    """Run the whole layer chain for one batch tile, entirely on-chip.

    x_ref : (TB, DP)        zero-padded input activations for this batch tile
    w_ref : (L, DP, DP)     zero-padded, pre-transposed weights (Din x Dout)
    b_ref : (L, 1, DP)      zero-padded biases
    o_ref : (TB, SLAB)      dense output slab; stored layer i's activation is
                            packed at cumulative lane offset sum(dout_<i).

    Layer outputs are gathered into 128-lane groups in-register and written
    with aligned, full-width stores (no masked partial stores, dense HBM
    writeback).
    """
    n_layers = len(dims) - 1
    tb = x_ref.shape[0]

    h = x_ref[...]

    # Greedy 128-lane group packer (all trace-time Python; widths are static).
    pending = []   # pieces of the current output group
    pend_w = 0     # lanes accumulated in the current group
    group = 0      # next 128-lane group index in the slab

    def flush(pad_to_full):
        nonlocal pending, pend_w, group
        if not pending:
            return
        parts = pending
        if pad_to_full and pend_w < _LANE:
            parts = parts + [jnp.zeros((tb, _LANE - pend_w), jnp.float32)]
        blk = parts[0] if len(parts) == 1 else jnp.concatenate(parts, axis=1)
        o_ref[:, group * _LANE:(group + 1) * _LANE] = blk
        group += 1
        pending = []
        pend_w = 0

    for i in range(n_layers):
        # MXU matmul with f32 accumulation, bias folded into the epilogue.
        y = jnp.dot(h, w_ref[i], preferred_element_type=jnp.float32) + b_ref[i]
        a = act if i < n_layers - 1 else "sigmoid"  # final layer: nn.Sigmoid()
        if a == "relu":
            y = jnp.maximum(y, 0.0)
        elif a == "sigmoid":
            y = jax.nn.sigmoid(y)
        elif a == "ste":
            # StraightThroughEstimator forward: (y > 0).float()
            y = (y > 0.0).astype(jnp.float32)
        else:
            raise ValueError(f"unknown activation {a}")

        if store[i]:
            dout = dims[i + 1]
            piece = y[:, :dout]
            # Append (splitting if it would straddle a 128-lane group), flush
            # every time a group completes.
            start, rem = 0, dout
            while rem > 0:
                take = min(rem, _LANE - pend_w)
                pending.append(piece[:, start:start + take])
                pend_w += take
                start += take
                rem -= take
                if pend_w == _LANE:
                    flush(False)
        h = y

    flush(True)   # zero-pad and store the trailing partial group


def pack_params(params, d_in):
    """One-time packing of PyTorch-layout (out,in) weights into stacked,
    zero-padded, pre-transposed tensors. Do NOT call per forward."""
    L = len(params)
    dims = (int(d_in),) + tuple(int(w.shape[0]) for (w, _) in params)
    DP = _round_up(max(dims), _LANE)
    w_stack = np.zeros((L, DP, DP), np.float32)
    b_stack = np.zeros((L, 1, DP), np.float32)
    for i, (w, b) in enumerate(params):
        dout, din = int(w.shape[0]), int(w.shape[1])
        w_stack[i, :din, :dout] = np.asarray(w, np.float32).T
        b_stack[i, 0, :dout] = np.asarray(b, np.float32)
    return jnp.asarray(w_stack), jnp.asarray(b_stack), dims


@functools.partial(
    jax.jit,
    static_argnames=("dims", "activation", "batch_tile", "return_intermediates"))
def mlp10_forward(x, w_stack, b_stack, *, dims, activation="relu",
                  batch_tile=512, return_intermediates=True):
    """Fused mlp10 forward.

    return_intermediates=True  -> list `op` of 11 arrays (PyTorch semantics).
    return_intermediates=False -> only op[-1]; skips ~90% of HBM writeback.
    """
    B, d_in = x.shape
    L, DP, _ = w_stack.shape
    assert dims[0] == d_in and len(dims) == L + 1

    # Batch tiling: minimize padding, and use >= 2 tiles whenever B > 8 so the
    # "parallel" batch axis can feed both TensorCores on v7x.
    n_tiles = max(-(-B // batch_tile), 2 if B > _SUBLANE else 1)
    TB = _round_up(-(-B // n_tiles), _SUBLANE)
    B_pad = n_tiles * TB

    # Dense slab layout (lane offsets of each stored layer).
    if return_intermediates:
        store = (True,) * L
        offsets, acc = [], 0
        for d in dims[1:]:
            offsets.append(acc)
            acc += d
        slab = _round_up(acc, _LANE)
    else:
        store = (False,) * (L - 1) + (True,)
        offsets = None
        slab = _round_up(dims[-1], _LANE)

    x_pad = jnp.zeros((B_pad, DP), jnp.float32).at[:B, :d_in].set(
        x.astype(jnp.float32))

    kernel = functools.partial(
        _mlp10_fused_kernel, act=activation, dims=dims, store=store)

    slab_out = pl.pallas_call(
        kernel,
        out_shape=jax.ShapeDtypeStruct((B_pad, slab), jnp.float32),
        grid=(n_tiles,),
        in_specs=[
            # activations: tiled over the batch grid axis
            pl.BlockSpec((TB, DP), lambda b: (b, 0)),
            # weights/biases: constant index_map -> VMEM-resident across grid
            pl.BlockSpec((L, DP, DP), lambda b: (0, 0, 0)),
            pl.BlockSpec((L, 1, DP), lambda b: (0, 0, 0)),
        ],
        out_specs=pl.BlockSpec((TB, slab), lambda b: (b, 0)),
        compiler_params=pltpu.CompilerParams(
            dimension_semantics=("parallel",),      # both TCs on v7x
            vmem_limit_bytes=32 * 1024 * 1024,      # headroom on v5e too
        ),
    )(x_pad, w_stack, b_stack)

    if not return_intermediates:
        return slab_out[:B, :dims[-1]]

    op = [x]
    for off, d in zip(offsets, dims[1:]):
        op.append(slab_out[:B, off:off + d])
    return op


def init_params(arch, key):
    """Kaiming-normal weights (PyTorch (out, in) layout), zero biases."""
    params = []
    for i in range(len(arch) - 1):
        din, dout = arch[i], arch[i + 1]
        key, sub = jax.random.split(key)
        std = (2.0 / din) ** 0.5  # kaiming_normal_, fan_in, gain=sqrt(2)
        w = std * jax.random.normal(sub, (dout, din), dtype=jnp.float32)
        b = jnp.zeros((dout,), dtype=jnp.float32)
        params.append((w, b))
    return params


def mlp10_reference(x, params, activation):
    """Pure-JAX reference of mlp10.forward (dropout=None)."""
    op = [x]
    h = x
    L = len(params)
    for i, (w, b) in enumerate(params):
        y = h @ w.T + b
        if i < L - 1:
            if activation == "relu":
                y = jnp.maximum(y, 0.0)
            elif activation == "sigmoid":
                y = jax.nn.sigmoid(y)
            elif activation == "ste":
                y = (y > 0.0).astype(jnp.float32)
        else:
            y = jax.nn.sigmoid(y)
        op.append(y)
        h = y
    return op


if __name__ == "__main__":
    # 10 linear layers need 11 widths. Small, forward-consistent shapes.
    arch = [16, 32, 32, 32, 32, 32, 32, 32, 32, 32, 8]

    key = jax.random.PRNGKey(0)
    key, xkey = jax.random.split(key)
    params = init_params(arch, key)
    # Weights/biases packed ONCE, outside the jitted per-call path.
    w_stack, b_stack, dims = pack_params(params, arch[0])

    # --- small batch (single grid tile) ---
    x = jax.random.normal(xkey, (8, arch[0]), dtype=jnp.float32)
    for activation in ("relu", "sigmoid"):
        op = jax.block_until_ready(
            mlp10_forward(x, w_stack, b_stack, dims=dims, activation=activation))
        ref = mlp10_reference(x, params, activation)
        assert len(op) == len(arch)  # 11 entries, like the PyTorch `op` list
        for got, want in zip(op, ref):
            assert got.shape == want.shape, (got.shape, want.shape)
            assert jnp.max(jnp.abs(got - want)) < 1e-4, activation

    # ste path: exercise the kernel branch; structural checks (hard threshold
    # makes bit-exact value comparison ill-conditioned).
    op_ste = jax.block_until_ready(
        mlp10_forward(x, w_stack, b_stack, dims=dims, activation="ste"))
    assert len(op_ste) == len(arch)
    for inter in op_ste[1:-1]:
        assert bool(jnp.all((inter == 0.0) | (inter == 1.0)))
    assert bool(jnp.all((op_ste[-1] > 0.0) & (op_ste[-1] < 1.0)))  # sigmoid out

    # --- larger, non-multiple batch: >= 2 grid tiles + minimal row padding ---
    key, xkey2 = jax.random.split(key)
    x2 = jax.random.normal(xkey2, (200, arch[0]), dtype=jnp.float32)
    op2 = jax.block_until_ready(
        mlp10_forward(x2, w_stack, b_stack, dims=dims, activation="relu"))
    ref2 = mlp10_reference(x2, params, "relu")
    for got, want in zip(op2, ref2):
        assert got.shape == want.shape
        assert jnp.max(jnp.abs(got - want)) < 1e-4

    # --- fast path: only final probabilities (skips intermediate writeback) ---
    y_last = jax.block_until_ready(
        mlp10_forward(x2, w_stack, b_stack, dims=dims, activation="relu",
                      return_intermediates=False))
    assert y_last.shape == ref2[-1].shape
    assert jnp.max(jnp.abs(y_last - ref2[-1])) < 1e-4

    print("KERNEL_OK")
</pallas_src>

<mosaic_0001>
module attributes {stable_mosaic.version = 11 : i64} {
  func.func @_mlp10_fused_kernel(%arg0: i32, %arg1: memref<8x128xf32, #tpu.memory_space<vmem>>, %arg2: memref<10x128x128xf32, #tpu.memory_space<vmem>>, %arg3: memref<10x1x128xf32, #tpu.memory_space<vmem>>, %arg4: memref<8x384xf32, #tpu.memory_space<vmem>>) attributes {dimension_semantics = [#tpu.dimension_semantics<parallel>], iteration_bounds = array<i64: 1>, scalar_prefetch = 0 : i64, scratch_operands = 0 : i64, tpu.core_type = #tpu.core_type<tc>, window_params = [{transform_indices = @transform_0, window_bounds = array<i64: 8, 128>}, {pipeline_mode = #tpu.pipeline_mode<synchronous>, transform_indices = @transform_1, window_bounds = array<i64: 10, 128, 128>}, {pipeline_mode = #tpu.pipeline_mode<synchronous>, transform_indices = @transform_2, window_bounds = array<i64: 10, 1, 128>}, {transform_indices = @transform_3, window_bounds = array<i64: 8, 384>}]} {
    %c0 = arith.constant 0 : index
    %c0_0 = arith.constant 0 : index
    %0 = vector.load %arg1[%c0, %c0_0] : memref<8x128xf32, #tpu.memory_space<vmem>>, vector<8x128xf32>
    %c0_1 = arith.constant 0 : index
    %c0_2 = arith.constant 0 : index
    %c0_3 = arith.constant 0 : index
    %1 = vector.load %arg2[%c0_1, %c0_2, %c0_3] : memref<10x128x128xf32, #tpu.memory_space<vmem>>, vector<1x128x128xf32>
    %2 = vector.shape_cast %1 : vector<1x128x128xf32> to vector<128x128xf32>
    %cst = arith.constant dense<0.000000e+00> : vector<8x128xf32>
    %3 = tpu.matmul %0, %2, %cst {dimension_numbers = #tpu.dot_dimension_numbers<[1], [0], [0], [1], [0, 0, 1, 1], [], []>} : vector<8x128xf32>, vector<128x128xf32>, vector<8x128xf32> -> vector<8x128xf32>
    %c0_4 = arith.constant 0 : index
    %c0_5 = arith.constant 0 : index
    %c0_6 = arith.constant 0 : index
    %4 = vector.load %arg3[%c0_4, %c0_5, %c0_6] : memref<10x1x128xf32, #tpu.memory_space<vmem>>, vector<1x1x128xf32>
    %5 = vector.shape_cast %4 : vector<1x1x128xf32> to vector<1x128xf32>
    %6 = vector.broadcast %5 : vector<1x128xf32> to vector<8x128xf32>
    %7 = arith.addf %3, %6 : vector<8x128xf32>
    %cst_7 = arith.constant 0.000000e+00 : f32
    %8 = vector.broadcast %cst_7 : f32 to vector<8x128xf32>
    %9 = arith.maximumf %7, %8 : vector<8x128xf32>
    %10 = vector.extract_strided_slice %9 {offsets = [0, 0], sizes = [8, 32], strides = [1, 1]} : vector<8x128xf32> to vector<8x32xf32>
    %c1 = arith.constant 1 : index
    %c0_8 = arith.constant 0 : index
    %c0_9 = arith.constant 0 : index
    %11 = vector.load %arg2[%c1, %c0_8, %c0_9] : memref<10x128x128xf32, #tpu.memory_space<vmem>>, vector<1x128x128xf32>
    %12 = vector.shape_cast %11 : vector<1x128x128xf32> to vector<128x128xf32>
    %cst_10 = arith.constant dense<0.000000e+00> : vector<8x128xf32>
    %13 = tpu.matmul %9, %12, %cst_10 {dimension_numbers = #tpu.dot_dimension_numbers<[1], [0], [0], [1], [0, 0, 1, 1], [], []>} : vector<8x128xf32>, vector<128x128xf32>, vector<8x128xf32> -> vector<8x128xf32>
    %c1_11 = arith.constant 1 : index
    %c0_12 = arith.constant 0 : index
    %c0_13 = arith.constant 0 : index
    %14 = vector.load %arg3[%c1_11, %c0_12, %c0_13] : memref<10x1x128xf32, #tpu.memory_space<vmem>>, vector<1x1x128xf32>
    %15 = vector.shape_cast %14 : vector<1x1x128xf32> to vector<1x128xf32>
    %16 = vector.broadcast %15 : vector<1x128xf32> to vector<8x128xf32>
    %17 = arith.addf %13, %16 : vector<8x128xf32>
    %cst_14 = arith.constant 0.000000e+00 : f32
    %18 = vector.broadcast %cst_14 : f32 to vector<8x128xf32>
    %19 = arith.maximumf %17, %18 : vector<8x128xf32>
    %20 = vector.extract_strided_slice %19 {offsets = [0, 0], sizes = [8, 32], strides = [1, 1]} : vector<8x128xf32> to vector<8x32xf32>
    %c2 = arith.constant 2 : index
    %c0_15 = arith.constant 0 : index
    %c0_16 = arith.constant 0 : index
    %21 = vector.load %arg2[%c2, %c0_15, %c0_16] : memref<10x128x128xf32, #tpu.memory_space<vmem>>, vector<1x128x128xf32>
    %22 = vector.shape_cast %21 : vector<1x128x128xf32> to vector<128x128xf32>
    %cst_17 = arith.constant dense<0.000000e+00> : vector<8x128xf32>
    %23 = tpu.matmul %19, %22, %cst_17 {dimension_numbers = #tpu.dot_dimension_numbers<[1], [0], [0], [1], [0, 0, 1, 1], [], []>} : vector<8x128xf32>, vector<128x128xf32>, vector<8x128xf32> -> vector<8x128xf32>
    %c2_18 = arith.constant 2 : index
    %c0_19 = arith.constant 0 : index
    %c0_20 = arith.constant 0 : index
    %24 = vector.load %arg3[%c2_18, %c0_19, %c0_20] : memref<10x1x128xf32, #tpu.memory_space<vmem>>, vector<1x1x128xf32>
    %25 = vector.shape_cast %24 : vector<1x1x128xf32> to vector<1x128xf32>
    %26 = vector.broadcast %25 : vector<1x128xf32> to vector<8x128xf32>
    %27 = arith.addf %23, %26 : vector<8x128xf32>
    %cst_21 = arith.constant 0.000000e+00 : f32
    %28 = vector.broadcast %cst_21 : f32 to vector<8x128xf32>
    %29 = arith.maximumf %27, %28 : vector<8x128xf32>
    %30 = vector.extract_strided_slice %29 {offsets = [0, 0], sizes = [8, 32], strides = [1, 1]} : vector<8x128xf32> to vector<8x32xf32>
    %c3 = arith.constant 3 : index
    %c0_22 = arith.constant 0 : index
    %c0_23 = arith.constant 0 : index
    %31 = vector.load %arg2[%c3, %c0_22, %c0_23] : memref<10x128x128xf32, #tpu.memory_space<vmem>>, vector<1x128x128xf32>
    %32 = vector.shape_cast %31 : vector<1x128x128xf32> to vector<128x128xf32>
    %cst_24 = arith.constant dense<0.000000e+00> : vector<8x128xf32>
    %33 = tpu.matmul %29, %32, %cst_24 {dimension_numbers = #tpu.dot_dimension_numbers<[1], [0], [0], [1], [0, 0, 1, 1], [], []>} : vector<8x128xf32>, vector<128x128xf32>, vector<8x128xf32> -> vector<8x128xf32>
    %c3_25 = arith.constant 3 : index
    %c0_26 = arith.constant 0 : index
    %c0_27 = arith.constant 0 : index
    %34 = vector.load %arg3[%c3_25, %c0_26, %c0_27] : memref<10x1x128xf32, #tpu.memory_space<vmem>>, vector<1x1x128xf32>
    %35 = vector.shape_cast %34 : vector<1x1x128xf32> to vector<1x128xf32>
    %36 = vector.broadcast %35 : vector<1x128xf32> to vector<8x128xf32>
    %37 = arith.addf %33, %36 : vector<8x128xf32>
    %cst_28 = arith.constant 0.000000e+00 : f32
    %38 = vector.broadcast %cst_28 : f32 to vector<8x128xf32>
    %39 = arith.maximumf %37, %38 : vector<8x128xf32>
    %40 = vector.extract_strided_slice %39 {offsets = [0, 0], sizes = [8, 32], strides = [1, 1]} : vector<8x128xf32> to vector<8x32xf32>
    %41 = tpu.concatenate %10, %20, %30, %40 in 1 : vector<8x32xf32>, vector<8x32xf32>, vector<8x32xf32>, vector<8x32xf32> -> vector<8x128xf32>
    %c0_29 = arith.constant 0 : index
    %c0_30 = arith.constant 0 : index
    %42 = vector.load %arg4[%c0_29, %c0_30] : memref<8x384xf32, #tpu.memory_space<vmem>>, vector<8x128xf32>
    tpu.vector_store %arg4[%c0_29, %c0_30], %41 {strides = array<i32>} : memref<8x384xf32, #tpu.memory_space<vmem>>, vector<8x128xf32>,
    %c4 = arith.constant 4 : index
    %c0_31 = arith.constant 0 : index
    %c0_32 = arith.constant 0 : index
    %43 = vector.load %arg2[%c4, %c0_31, %c0_32] : memref<10x128x128xf32, #tpu.memory_space<vmem>>, vector<1x128x128xf32>
    %44 = vector.shape_cast %43 : vector<1x128x128xf32> to vector<128x128xf32>
    %cst_33 = arith.constant dense<0.000000e+00> : vector<8x128xf32>
    %45 = tpu.matmul %39, %44, %cst_33 {dimension_numbers = #tpu.dot_dimension_numbers<[1], [0], [0], [1], [0, 0, 1, 1], [], []>} : vector<8x128xf32>, vector<128x128xf32>, vector<8x128xf32> -> vector<8x128xf32>
    %c4_34 = arith.constant 4 : index
    %c0_35 = arith.constant 0 : index
    %c0_36 = arith.constant 0 : index
    %46 = vector.load %arg3[%c4_34, %c0_35, %c0_36] : memref<10x1x128xf32, #tpu.memory_space<vmem>>, vector<1x1x128xf32>
    %47 = vector.shape_cast %46 : vector<1x1x128xf32> to vector<1x128xf32>
    %48 = vector.broadcast %47 : vector<1x128xf32> to vector<8x128xf32>
    %49 = arith.addf %45, %48 : vector<8x128xf32>
    %cst_37 = arith.constant 0.000000e+00 : f32
    %50 = vector.broadcast %cst_37 : f32 to vector<8x128xf32>
    %51 = arith.maximumf %49, %50 : vector<8x128xf32>
    %52 = vector.extract_strided_slice %51 {offsets = [0, 0], sizes = [8, 32], strides = [1, 1]} : vector<8x128xf32> to vector<8x32xf32>
    %c5 = arith.constant 5 : index
    %c0_38 = arith.constant 0 : index
    %c0_39 = arith.constant 0 : index
    %53 = vector.load %arg2[%c5, %c0_38, %c0_39] : memref<10x128x128xf32, #tpu.memory_space<vmem>>, vector<1x128x128xf32>
    %54 = vector.shape_cast %53 : vector<1x128x128xf32> to vector<128x128xf32>
    %cst_40 = arith.constant dense<0.000000e+00> : vector<8x128xf32>
    %55 = tpu.matmul %51, %54, %cst_40 {dimension_numbers = #tpu.dot_dimension_numbers<[1], [0], [0], [1], [0, 0, 1, 1], [], []>} : vector<8x128xf32>, vector<128x128xf32>, vector<8x128xf32> -> vector<8x128xf32>
    %c5_41 = arith.constant 5 : index
    %c0_42 = arith.constant 0 : index
    %c0_43 = arith.constant 0 : index
    %56 = vector.load %arg3[%c5_41, %c0_42, %c0_43] : memref<10x1x128xf32, #tpu.memory_space<vmem>>, vector<1x1x128xf32>
    %57 = vector.shape_cast %56 : vector<1x1x128xf32> to vector<1x128xf32>
    %58 = vector.broadcast %57 : vector<1x128xf32> to vector<8x128xf32>
    %59 = arith.addf %55, %58 : vector<8x128xf32>
    %cst_44 = arith.constant 0.000000e+00 : f32
    %60 = vector.broadcast %cst_44 : f32 to vector<8x128xf32>
    %61 = arith.maximumf %59, %60 : vector<8x128xf32>
    %62 = vector.extract_strided_slice %61 {offsets = [0, 0], sizes = [8, 32], strides = [1, 1]} : vector<8x128xf32> to vector<8x32xf32>
    %c6 = arith.constant 6 : index
    %c0_45 = arith.constant 0 : index
    %c0_46 = arith.constant 0 : index
    %63 = vector.load %arg2[%c6, %c0_45, %c0_46] : memref<10x128x128xf32, #tpu.memory_space<vmem>>, vector<1x128x128xf32>
    %64 = vector.shape_cast %63 : vector<1x128x128xf32> to vector<128x128xf32>
    %cst_47 = arith.constant dense<0.000000e+00> : vector<8x128xf32>
    %65 = tpu.matmul %61, %64, %cst_47 {dimension_numbers = #tpu.dot_dimension_numbers<[1], [0], [0], [1], [0, 0, 1, 1], [], []>} : vector<8x128xf32>, vector<128x128xf32>, vector<8x128xf32> -> vector<8x128xf32>
    %c6_48 = arith.constant 6 : index
    %c0_49 = arith.constant 0 : index
    %c0_50 = arith.constant 0 : index
    %66 = vector.load %arg3[%c6_48, %c0_49, %c0_50] : memref<10x1x128xf32, #tpu.memory_space<vmem>>, vector<1x1x128xf32>
    %67 = vector.shape_cast %66 : vector<1x1x128xf32> to vector<1x128xf32>
    %68 = vector.broadcast %67 : vector<1x128xf32> to vector<8x128xf32>
    %69 = arith.addf %65, %68 : vector<8x128xf32>
    %cst_51 = arith.constant 0.000000e+00 : f32
    %70 = vector.broadcast %cst_51 : f32 to vector<8x128xf32>
    %71 = arith.maximumf %69, %70 : vector<8x128xf32>
    %72 = vector.extract_strided_slice %71 {offsets = [0, 0], sizes = [8, 32], strides = [1, 1]} : vector<8x128xf32> to vector<8x32xf32>
    %c7 = arith.constant 7 : index
    %c0_52 = arith.constant 0 : index
    %c0_53 = arith.constant 0 : index
    %73 = vector.load %arg2[%c7, %c0_52, %c0_53] : memref<10x128x128xf32, #tpu.memory_space<vmem>>, vector<1x128x128xf32>
    %74 = vector.shape_cast %73 : vector<1x128x128xf32> to vector<128x128xf32>
    %cst_54 = arith.constant dense<0.000000e+00> : vector<8x128xf32>
    %75 = tpu.matmul %71, %74, %cst_54 {dimension_numbers = #tpu.dot_dimension_numbers<[1], [0], [0], [1], [0, 0, 1, 1], [], []>} : vector<8x128xf32>, vector<128x128xf32>, vector<8x128xf32> -> vector<8x128xf32>
    %c7_55 = arith.constant 7 : index
    %c0_56 = arith.constant 0 : index
    %c0_57 = arith.constant 0 : index
    %76 = vector.load %arg3[%c7_55, %c0_56, %c0_57] : memref<10x1x128xf32, #tpu.memory_space<vmem>>, vector<1x1x128xf32>
    %77 = vector.shape_cast %76 : vector<1x1x128xf32> to vector<1x128xf32>
    %78 = vector.broadcast %77 : vector<1x128xf32> to vector<8x128xf32>
    %79 = arith.addf %75, %78 : vector<8x128xf32>
    %cst_58 = arith.constant 0.000000e+00 : f32
    %80 = vector.broadcast %cst_58 : f32 to vector<8x128xf32>
    %81 = arith.maximumf %79, %80 : vector<8x128xf32>
    %82 = vector.extract_strided_slice %81 {offsets = [0, 0], sizes = [8, 32], strides = [1, 1]} : vector<8x128xf32> to vector<8x32xf32>
    %83 = tpu.concatenate %52, %62, %72, %82 in 1 : vector<8x32xf32>, vector<8x32xf32>, vector<8x32xf32>, vector<8x32xf32> -> vector<8x128xf32>
    %c0_59 = arith.constant 0 : index
    %c128 = arith.constant 128 : index
    %84 = vector.load %arg4[%c0_59, %c128] : memref<8x384xf32, #tpu.memory_space<vmem>>, vector<8x128xf32>
    tpu.vector_store %arg4[%c0_59, %c128], %83 {strides = array<i32>} : memref<8x384xf32, #tpu.memory_space<vmem>>, vector<8x128xf32>,
    %c8 = arith.constant 8 : index
    %c0_60 = arith.constant 0 : index
    %c0_61 = arith.constant 0 : index
    %85 = vector.load %arg2[%c8, %c0_60, %c0_61] : memref<10x128x128xf32, #tpu.memory_space<vmem>>, vector<1x128x128xf32>
    %86 = vector.shape_cast %85 : vector<1x128x128xf32> to vector<128x128xf32>
    %cst_62 = arith.constant dense<0.000000e+00> : vector<8x128xf32>
    %87 = tpu.matmul %81, %86, %cst_62 {dimension_numbers = #tpu.dot_dimension_numbers<[1], [0], [0], [1], [0, 0, 1, 1], [], []>} : vector<8x128xf32>, vector<128x128xf32>, vector<8x128xf32> -> vector<8x128xf32>
    %c8_63 = arith.constant 8 : index
    %c0_64 = arith.constant 0 : index
    %c0_65 = arith.constant 0 : index
    %88 = vector.load %arg3[%c8_63, %c0_64, %c0_65] : memref<10x1x128xf32, #tpu.memory_space<vmem>>, vector<1x1x128xf32>
    %89 = vector.shape_cast %88 : vector<1x1x128xf32> to vector<1x128xf32>
    %90 = vector.broadcast %89 : vector<1x128xf32> to vector<8x128xf32>
    %91 = arith.addf %87, %90 : vector<8x128xf32>
    %cst_66 = arith.constant 0.000000e+00 : f32
    %92 = vector.broadcast %cst_66 : f32 to vector<8x128xf32>
    %93 = arith.maximumf %91, %92 : vector<8x128xf32>
    %94 = vector.extract_strided_slice %93 {offsets = [0, 0], sizes = [8, 32], strides = [1, 1]} : vector<8x128xf32> to vector<8x32xf32>
    %c9 = arith.constant 9 : index
    %c0_67 = arith.constant 0 : index
    %c0_68 = arith.constant 0 : index
    %95 = vector.load %arg2[%c9, %c0_67, %c0_68] : memref<10x128x128xf32, #tpu.memory_space<vmem>>, vector<1x128x128xf32>
    %96 = vector.shape_cast %95 : vector<1x128x128xf32> to vector<128x128xf32>
    %cst_69 = arith.constant dense<0.000000e+00> : vector<8x128xf32>
    %97 = tpu.matmul %93, %96, %cst_69 {dimension_numbers = #tpu.dot_dimension_numbers<[1], [0], [0], [1], [0, 0, 1, 1], [], []>} : vector<8x128xf32>, vector<128x128xf32>, vector<8x128xf32> -> vector<8x128xf32>
    %c9_70 = arith.constant 9 : index
    %c0_71 = arith.constant 0 : index
    %c0_72 = arith.constant 0 : index
    %98 = vector.load %arg3[%c9_70, %c0_71, %c0_72] : memref<10x1x128xf32, #tpu.memory_space<vmem>>, vector<1x1x128xf32>
    %99 = vector.shape_cast %98 : vector<1x1x128xf32> to vector<1x128xf32>
    %100 = vector.broadcast %99 : vector<1x128xf32> to vector<8x128xf32>
    %101 = arith.addf %97, %100 : vector<8x128xf32>
    %102 = arith.negf %101 : vector<8x128xf32>
    %103 = math.exp %102 : vector<8x128xf32>
    %cst_73 = arith.constant 1.000000e+00 : f32
    %104 = vector.broadcast %cst_73 : f32 to vector<8x128xf32>
    %105 = arith.addf %104, %103 : vector<8x128xf32>
    %106 = arith.divf %104, %105 : vector<8x128xf32>
    %107 = vector.extract_strided_slice %106 {offsets = [0, 0], sizes = [8, 8], strides = [1, 1]} : vector<8x128xf32> to vector<8x8xf32>
    %cst_74 = arith.constant 0.000000e+00 : f32
    %108 = vector.broadcast %cst_74 : f32 to vector<8x88xf32>
    %109 = tpu.concatenate %94, %107, %108 in 1 : vector<8x32xf32>, vector<8x8xf32>, vector<8x88xf32> -> vector<8x128xf32>
    %c0_75 = arith.constant 0 : index
    %c256 = arith.constant 256 : index
    %110 = vector.load %arg4[%c0_75, %c256] : memref<8x384xf32, #tpu.memory_space<vmem>>, vector<8x128xf32>
    tpu.vector_store %arg4[%c0_75, %c256], %109 {strides = array<i32>} : memref<8x384xf32, #tpu.memory_space<vmem>>, vector<8x128xf32>,
    return
  }
  func.func @transform_0(%arg0: i32) -> (i32, i32) {
    %c0_i32 = arith.constant 0 : i32
    %c0_i32_0 = arith.constant 0 : i32
    return %arg0, %c0_i32 : i32, i32
  }
  func.func @transform_1(%arg0: i32) -> (i32, i32, i32) {
    %c0_i32 = arith.constant 0 : i32
    %c0_i32_0 = arith.constant 0 : i32
    %c0_i32_1 = arith.constant 0 : i32
    %c0_i32_2 = arith.constant 0 : i32
    return %c0_i32, %c0_i32_0, %c0_i32_1 : i32, i32, i32
  }
  func.func @transform_2(%arg0: i32) -> (i32, i32, i32) {
    %c0_i32 = arith.constant 0 : i32
    %c0_i32_0 = arith.constant 0 : i32
    %c0_i32_1 = arith.constant 0 : i32
    %c0_i32_2 = arith.constant 0 : i32
    return %c0_i32, %c0_i32_0, %c0_i32_1 : i32, i32, i32
  }
  func.func @transform_3(%arg0: i32) -> (i32, i32) {
    %c0_i32 = arith.constant 0 : i32
    %c0_i32_0 = arith.constant 0 : i32
    return %arg0, %c0_i32 : i32, i32
  }
}

</mosaic_0001>

<llo_original>
// kernel: mlp10_forward.1
$region0: #{mlp10_forward.1}
  #allocation0 [shape = 'u32[]', space=smem, size = 0x4, offset = 0x4, fixed_abs, tag = 'smem constant byte address 0x4 - core index']
  #allocation1 [shape = 'u32[144,128]{1,0:T(1,128)}', space=vmem, size = 0x12000, scoped, tag = 'internal scratch']
  %s0 = inlined_call_operand.vmem [shape: f32[8,128], index: 0, kind: input, shape index: {}]
  %s1 = inlined_call_operand.hbm [shape: f32[10,128,128], index: 1, kind: input, shape index: {}]
  %s2 = inlined_call_operand.vmem [shape: f32[10,1,128], index: 2, kind: input, shape index: {}]
  %s3 = inlined_call_operand.vmem [shape: f32[8,384], index: 3, kind: output, shape index: {}]
  %s4 = sld [smem:[#allocation0]]
  $region26: #{mlp10_forward.1} parent=0
    _
  %s6 = ssub.s32 1, %s4
  %s7 = scalar_select 0, %s6, %s4
  $region1: #{mlp10_forward.1} parent=0
    #allocation2 [shape = 'u8[655360]{0}', space=vmem, size = 0xa0000, scoped, tag = 'input window, operand 1, single buffered']
    #allocation3 [shape = 's32[1]{0}', space=sflag, size = 0x4, scoped, tag = 'scoped memory for mlp10_forward.1']
    %8 = vsyncpa [#allocation3], 0
    // Predicated region
    $region2: #{mlp10_forward.1} parent=1 // pred_check
      _
    $region3: #{mlp10_forward.1} parent=1 // pred_check_branch
      %10 = sbr.rel (0) target = $region5
    $region4: #{mlp10_forward.1} parent=1 // pred_region
      _
    $region5: #{mlp10_forward.1} parent=1 // pred_fallthru
      _
    // Predicated region
    $region6: #{mlp10_forward.1} parent=1 // pred_check
      _
    $region7: #{mlp10_forward.1} parent=1 // pred_check_branch
      %12 = sbr.rel (0) target = $region9
    $region8: #{mlp10_forward.1} parent=1 // pred_region
      %s14 = ssub.s32 20480, 20480
      %15 = vsyncadd [#allocation3], %s14
      %s16 = sshll.u32 [#allocation2], 4
      %s17 = int_to_ptr.vmem [resolvable:$true] %s16
      %22 = dma.hbm_to_vmem [thread:$0]  %s1, 20480, %s17, [#allocation3], 128, 128, 8
    $region9: #{mlp10_forward.1} parent=1 // pred_fallthru
      _
    // Predicated region
    $region10: #{mlp10_forward.1} parent=1 // pred_check
      _
    $region11: #{mlp10_forward.1} parent=1 // pred_check_branch
      %24 = sbr.rel (0) target = $region13
    $region12: #{mlp10_forward.1} parent=1 // pred_region
      _
    $region13: #{mlp10_forward.1} parent=1 // pred_fallthru
      _
    // Predicated region
    $region14: #{mlp10_forward.1} parent=1 // pred_check
      _
    $region15: #{mlp10_forward.1} parent=1 // pred_check_branch
      %26 = sbr.rel (0) target = $region17
    $region16: #{mlp10_forward.1} parent=1 // pred_region
      %27 = dma.done [#allocation3], 20480
    $region17: #{mlp10_forward.1} parent=1 // pred_fallthru
      _
    %v28 = vld [vmem:[%s0] sm:$0xff]
    %v29 = vld [vmem:[#allocation2] sm:$0xff]
    %v30 = vld [vmem:[#allocation2 + $0x8] sm:$0xff]
    %v31 = vld [vmem:[#allocation2 + $0x10] sm:$0xff]
    %v32 = vld [vmem:[#allocation2 + $0x18] sm:$0xff]
    %v33 = vld [vmem:[#allocation2 + $0x20] sm:$0xff]
    %v34 = vld [vmem:[#allocation2 + $0x28] sm:$0xff]
    %v35 = vld [vmem:[#allocation2 + $0x30] sm:$0xff]
    %v36 = vld [vmem:[#allocation2 + $0x38] sm:$0xff]
    %v37 = vld [vmem:[#allocation2 + $0x40] sm:$0xff]
    %v38 = vld [vmem:[#allocation2 + $0x48] sm:$0xff]
    %v39 = vld [vmem:[#allocation2 + $0x50] sm:$0xff]
    %v40 = vld [vmem:[#allocation2 + $0x58] sm:$0xff]
    %v41 = vld [vmem:[#allocation2 + $0x60] sm:$0xff]
    %v42 = vld [vmem:[#allocation2 + $0x68] sm:$0xff]
    %v43 = vld [vmem:[#allocation2 + $0x70] sm:$0xff]
    %v44 = vld [vmem:[#allocation2 + $0x78] sm:$0xff]
    %v45 = vld [vmem:[%s2] sm:$0x1]
    %v47 = vlaneseq
    %v48 = vshrl.u32 %v47, 7
    %v49 = vsub.s32 0, %v48
    %v50 = vrot.slane %v45, %v49
    %52 = vmatprep.subr.mxu0 0.0
    %53 = vmatpush1.msra.mxu0 %v29
    %54 = vmatprep.subr.mxu0 0.0
    %55 = vmatpush1.msra.mxu0 %v30
    %56 = vmatprep.subr.mxu0 0.0
    %57 = vmatpush1.msra.mxu0 %v31
    %58 = vmatprep.subr.mxu0 0.0
    %59 = vmatpush1.msra.mxu0 %v32
    %60 = vmatprep.subr.mxu0 0.0
    %61 = vmatpush1.msra.mxu0 %v33
    %62 = vmatprep.subr.mxu0 0.0
    %63 = vmatpush1.msra.mxu0 %v34
    %64 = vmatprep.subr.mxu0 0.0
    %65 = vmatpush1.msra.mxu0 %v35
    %66 = vmatprep.subr.mxu0 0.0
    %67 = vmatpush1.msra.mxu0 %v36
    %68 = vmatprep.subr.mxu0 0.0
    %69 = vmatpush1.msra.mxu0 %v37
    %70 = vmatprep.subr.mxu0 0.0
    %71 = vmatpush1.msra.mxu0 %v38
    %72 = vmatprep.subr.mxu0 0.0
    %73 = vmatpush1.msra.mxu0 %v39
    %74 = vmatprep.subr.mxu0 0.0
    %75 = vmatpush1.msra.mxu0 %v40
    %76 = vmatprep.subr.mxu0 0.0
    %77 = vmatpush1.msra.mxu0 %v41
    %78 = vmatprep.subr.mxu0 0.0
    %79 = vmatpush1.msra.mxu0 %v42
    %80 = vmatprep.subr.mxu0 0.0
    %81 = vmatpush1.msra.mxu0 %v43
    %82 = vmatprep.subr.mxu0 0.0
    %83 = vmatpush1.msra.mxu0 %v44
    %84 = vmatprep.subr.mxu0 0.0
    %85 = vmatpush1.msra.mxu0 0.0
    %86 = vmatprep.subr.mxu0 0.0
    %87 = vmatpush1.msra.mxu0 0.0
    %88 = vmatprep.subr.mxu0 0.0
    %89 = vmatpush1.msra.mxu0 0.0
    %90 = vmatprep.subr.mxu0 0.0
    %91 = vmatpush1.msra.mxu0 0.0
    %92 = vmatprep.subr.mxu0 0.0
    %93 = vmatpush1.msra.mxu0 0.0
    %94 = vmatprep.subr.mxu0 0.0
    %95 = vmatpush1.msra.mxu0 0.0
    %96 = vmatprep.subr.mxu0 0.0
    %97 = vmatpush1.msra.mxu0 0.0
    %98 = vmatprep.subr.mxu0 0.0
    %99 = vmatpush1.msra.mxu0 0.0
    %100 = vmatprep.subr.mxu0 0.0
    %101 = vmatpush1.msra.mxu0 0.0
    %102 = vmatprep.subr.mxu0 0.0
    %103 = vmatpush1.msra.mxu0 0.0
    %104 = vmatprep.subr.mxu0 0.0
    %105 = vmatpush1.msra.mxu0 0.0
    %106 = vmatprep.subr.mxu0 0.0
    %107 = vmatpush1.msra.mxu0 0.0
    %108 = vmatprep.subr.mxu0 0.0
    %109 = vmatpush1.msra.mxu0 0.0
    %110 = vmatprep.subr.mxu0 0.0
    %111 = vmatpush1.msra.mxu0 0.0
    %112 = vmatprep.subr.mxu0 0.0
    %113 = vmatpush1.msra.mxu0 0.0
    %114 = vmatprep.subr.mxu0 0.0
    %115 = vmatpush1.msra.mxu0 0.0
    %116 = vmatprep.mubr.f32.mxu0 0.0
    %117 = vmatmul.mubr.f32.gmra.mrb[0].mxu0 %v28
    %v118 = vpop.f32.mrb[0].mxu0
    %v119 = vadd.f32 %v50, %v118
    %v120 = vpop.f32.mrb[0].mxu0
    %121 = vdwg.mxu0
    %v122 = vmax.f32 %v119, 0.0
    %s123 = scalar_lea.vmem [#allocation2], 128
    %v124 = vld [vmem:[%s123] sm:$0xff]
    %v125 = vld [vmem:[%s123 + $0x8] sm:$0xff]
    %v126 = vld [vmem:[%s123 + $0x10] sm:$0xff]
    %v127 = vld [vmem:[%s123 + $0x18] sm:$0xff]
    %v128 = vld [vmem:[%s123 + $0x20] sm:$0xff]
    %v129 = vld [vmem:[%s123 + $0x28] sm:$0xff]
    %v130 = vld [vmem:[%s123 + $0x30] sm:$0xff]
    %v131 = vld [vmem:[%s123 + $0x38] sm:$0xff]
    %v132 = vld [vmem:[%s123 + $0x40] sm:$0xff]
    %v133 = vld [vmem:[%s123 + $0x48] sm:$0xff]
    %v134 = vld [vmem:[%s123 + $0x50] sm:$0xff]
    %v135 = vld [vmem:[%s123 + $0x58] sm:$0xff]
    %v136 = vld [vmem:[%s123 + $0x60] sm:$0xff]
    %v137 = vld [vmem:[%s123 + $0x68] sm:$0xff]
    %v138 = vld [vmem:[%s123 + $0x70] sm:$0xff]
    %v139 = vld [vmem:[%s123 + $0x78] sm:$0xff]
    %s140 = scalar_lea.vmem %s2, 1
    %v141 = vld [vmem:[%s140] sm:$0x1]
    %v143 = vlaneseq
    %v144 = vshrl.u32 %v143, 7
    %v145 = vsub.s32 0, %v144
    %v146 = vrot.slane %v141, %v145
    %148 = vmatprep.subr.mxu0 0.0
    %149 = vmatpush1.msra.mxu0 %v124
    %150 = vmatprep.subr.mxu0 0.0
    %151 = vmatpush1.msra.mxu0 %v125
    %152 = vmatprep.subr.mxu0 0.0
    %153 = vmatpush1.msra.mxu0 %v126
    %154 = vmatprep.subr.mxu0 0.0
    %155 = vmatpush1.msra.mxu0 %v127
    %156 = vmatprep.subr.mxu0 0.0
    %157 = vmatpush1.msra.mxu0 %v128
    %158 = vmatprep.subr.mxu0 0.0
    %159 = vmatpush1.msra.mxu0 %v129
    %160 = vmatprep.subr.mxu0 0.0
    %161 = vmatpush1.msra.mxu0 %v130
    %162 = vmatprep.subr.mxu0 0.0
    %163 = vmatpush1.msra.mxu0 %v131
    %164 = vmatprep.subr.mxu0 0.0
    %165 = vmatpush1.msra.mxu0 %v132
    %166 = vmatprep.subr.mxu0 0.0
    %167 = vmatpush1.msra.mxu0 %v133
    %168 = vmatprep.subr.mxu0 0.0
    %169 = vmatpush1.msra.mxu0 %v134
    %170 = vmatprep.subr.mxu0 0.0
    %171 = vmatpush1.msra.mxu0 %v135
    %172 = vmatprep.subr.mxu0 0.0
    %173 = vmatpush1.msra.mxu0 %v136
    %174 = vmatprep.subr.mxu0 0.0
    %175 = vmatpush1.msra.mxu0 %v137
    %176 = vmatprep.subr.mxu0 0.0
    %177 = vmatpush1.msra.mxu0 %v138
    %178 = vmatprep.subr.mxu0 0.0
    %179 = vmatpush1.msra.mxu0 %v139
    %180 = vmatprep.subr.mxu0 0.0
    %181 = vmatpush1.msra.mxu0 0.0
    %182 = vmatprep.subr.mxu0 0.0
    %183 = vmatpush1.msra.mxu0 0.0
    %184 = vmatprep.subr.mxu0 0.0
    %185 = vmatpush1.msra.mxu0 0.0
    %186 = vmatprep.subr.mxu0 0.0
    %187 = vmatpush1.msra.mxu0 0.0
    %188 = vmatprep.subr.mxu0 0.0
    %189 = vmatpush1.msra.mxu0 0.0
    %190 = vmatprep.subr.mxu0 0.0
    %191 = vmatpush1.msra.mxu0 0.0
    %192 = vmatprep.subr.mxu0 0.0
    %193 = vmatpush1.msra.mxu0 0.0
    %194 = vmatprep.subr.mxu0 0.0
    %195 = vmatpush1.msra.mxu0 0.0
    %196 = vmatprep.subr.mxu0 0.0
    %197 = vmatpush1.msra.mxu0 0.0
    %198 = vmatprep.subr.mxu0 0.0
    %199 = vmatpush1.msra.mxu0 0.0
    %200 = vmatprep.subr.mxu0 0.0
    %201 = vmatpush1.msra.mxu0 0.0
    %202 = vmatprep.subr.mxu0 0.0
    %203 = vmatpush1.msra.mxu0 0.0
    %204 = vmatprep.subr.mxu0 0.0
    %205 = vmatpush1.msra.mxu0 0.0
    %206 = vmatprep.subr.mxu0 0.0
    %207 = vmatpush1.msra.mxu0 0.0
    %208 = vmatprep.subr.mxu0 0.0
    %209 = vmatpush1.msra.mxu0 0.0
    %210 = vmatprep.subr.mxu0 0.0
    %211 = vmatpush1.msra.mxu0 0.0
    %212 = vmatprep.mubr.f32.mxu0 0.0
    %213 = vmatmul.mubr.f32.gmra.mrb[0].mxu0 %v122
    %v214 = vpop.f32.mrb[0].mxu0
    %v215 = vadd.f32 %v146, %v214
    %v216 = vpop.f32.mrb[0].mxu0
    %217 = vdwg.mxu0
    %v218 = vmax.f32 %v215, 0.0
    %s219 = scalar_lea.vmem [#allocation2], 256
    %v220 = vld [vmem:[%s219] sm:$0xff]
    %v221 = vld [vmem:[%s219 + $0x8] sm:$0xff]
    %v222 = vld [vmem:[%s219 + $0x10] sm:$0xff]
    %v223 = vld [vmem:[%s219 + $0x18] sm:$0xff]
    %v224 = vld [vmem:[%s219 + $0x20] sm:$0xff]
    %v225 = vld [vmem:[%s219 + $0x28] sm:$0xff]
    %v226 = vld [vmem:[%s219 + $0x30] sm:$0xff]
    %v227 = vld [vmem:[%s219 + $0x38] sm:$0xff]
    %v228 = vld [vmem:[%s219 + $0x40] sm:$0xff]
    %v229 = vld [vmem:[%s219 + $0x48] sm:$0xff]
    %v230 = vld [vmem:[%s219 + $0x50] sm:$0xff]
    %v231 = vld [vmem:[%s219 + $0x58] sm:$0xff]
    %v232 = vld [vmem:[%s219 + $0x60] sm:$0xff]
    %v233 = vld [vmem:[%s219 + $0x68] sm:$0xff]
    %v234 = vld [vmem:[%s219 + $0x70] sm:$0xff]
    %v235 = vld [vmem:[%s219 + $0x78] sm:$0xff]
    %s236 = scalar_lea.vmem %s2, 2
    %v237 = vld [vmem:[%s236] sm:$0x1]
    %v239 = vlaneseq
    %v240 = vshrl.u32 %v239, 7
    %v241 = vsub.s32 0, %v240
    %v242 = vrot.slane %v237, %v241
    %244 = vmatprep.subr.mxu0 0.0
    %245 = vmatpush1.msra.mxu0 %v220
    %246 = vmatprep.subr.mxu0 0.0
    %247 = vmatpush1.msra.mxu0 %v221
    %248 = vmatprep.subr.mxu0 0.0
    %249 = vmatpush1.msra.mxu0 %v222
    %250 = vmatprep.subr.mxu0 0.0
    %251 = vmatpush1.msra.mxu0 %v223
    %252 = vmatprep.subr.mxu0 0.0
    %253 = vmatpush1.msra.mxu0 %v224
    %254 = vmatprep.subr.mxu0 0.0
    %255 = vmatpush1.msra.mxu0 %v225
    %256 = vmatprep.subr.mxu0 0.0
    %257 = vmatpush1.msra.mxu0 %v226
    %258 = vmatprep.subr.mxu0 0.0
    %259 = vmatpush1.msra.mxu0 %v227
    %260 = vmatprep.subr.mxu0 0.0
    %261 = vmatpush1.msra.mxu0 %v228
    %262 = vmatprep.subr.mxu0 0.0
    %263 = vmatpush1.msra.mxu0 %v229
    %264 = vmatprep.subr.mxu0 0.0
    %265 = vmatpush1.msra.mxu0 %v230
    %266 = vmatprep.subr.mxu0 0.0
    %267 = vmatpush1.msra.mxu0 %v231
    %268 = vmatprep.subr.mxu0 0.0
    %269 = vmatpush1.msra.mxu0 %v232
    %270 = vmatprep.subr.mxu0 0.0
    %271 = vmatpush1.msra.mxu0 %v233
    %272 = vmatprep.subr.mxu0 0.0
    %273 = vmatpush1.msra.mxu0 %v234
    %274 = vmatprep.subr.mxu0 0.0
    %275 = vmatpush1.msra.mxu0 %v235
    %276 = vmatprep.subr.mxu0 0.0
    %277 = vmatpush1.msra.mxu0 0.0
    %278 = vmatprep.subr.mxu0 0.0
    %279 = vmatpush1.msra.mxu0 0.0
    %280 = vmatprep.subr.mxu0 0.0
    %281 = vmatpush1.msra.mxu0 0.0
    %282 = vmatprep.subr.mxu0 0.0
    %283 = vmatpush1.msra.mxu0 0.0
    %284 = vmatprep.subr.mxu0 0.0
    %285 = vmatpush1.msra.mxu0 0.0
    %286 = vmatprep.subr.mxu0 0.0
    %287 = vmatpush1.msra.mxu0 0.0
    %288 = vmatprep.subr.mxu0 0.0
    %289 = vmatpush1.msra.mxu0 0.0
    %290 = vmatprep.subr.mxu0 0.0
    %291 = vmatpush1.msra.mxu0 0.0
    %292 = vmatprep.subr.mxu0 0.0
    %293 = vmatpush1.msra.mxu0 0.0
    %294 = vmatprep.subr.mxu0 0.0
    %295 = vmatpush1.msra.mxu0 0.0
    %296 = vmatprep.subr.mxu0 0.0
    %297 = vmatpush1.msra.mxu0 0.0
    %298 = vmatprep.subr.mxu0 0.0
    %299 = vmatpush1.msra.mxu0 0.0
    %300 = vmatprep.subr.mxu0 0.0
    %301 = vmatpush1.msra.mxu0 0.0
    %302 = vmatprep.subr.mxu0 0.0
    %303 = vmatpush1.msra.mxu0 0.0
    %304 = vmatprep.subr.mxu0 0.0
    %305 = vmatpush1.msra.mxu0 0.0
    %306 = vmatprep.subr.mxu0 0.0
    %307 = vmatpush1.msra.mxu0 0.0
    %308 = vmatprep.mubr.f32.mxu0 0.0
    %309 = vmatmul.mubr.f32.gmra.mrb[0].mxu0 %v218
    %v310 = vpop.f32.mrb[0].mxu0
    %v311 = vadd.f32 %v242, %v310
    %v312 = vpop.f32.mrb[0].mxu0
    %313 = vdwg.mxu0
    %v314 = vmax.f32 %v311, 0.0
    %s315 = scalar_lea.vmem [#allocation2], 384
    %v316 = vld [vmem:[%s315] sm:$0xff]
    %v317 = vld [vmem:[%s315 + $0x8] sm:$0xff]
    %v318 = vld [vmem:[%s315 + $0x10] sm:$0xff]
    %v319 = vld [vmem:[%s315 + $0x18] sm:$0xff]
    %v320 = vld [vmem:[%s315 + $0x20] sm:$0xff]
    %v321 = vld [vmem:[%s315 + $0x28] sm:$0xff]
    %v322 = vld [vmem:[%s315 + $0x30] sm:$0xff]
    %v323 = vld [vmem:[%s315 + $0x38] sm:$0xff]
    %v324 = vld [vmem:[%s315 + $0x40] sm:$0xff]
    %v325 = vld [vmem:[%s315 + $0x48] sm:$0xff]
    %v326 = vld [vmem:[%s315 + $0x50] sm:$0xff]
    %v327 = vld [vmem:[%s315 + $0x58] sm:$0xff]
    %v328 = vld [vmem:[%s315 + $0x60] sm:$0xff]
    %v329 = vld [vmem:[%s315 + $0x68] sm:$0xff]
    %v330 = vld [vmem:[%s315 + $0x70] sm:$0xff]
    %v331 = vld [vmem:[%s315 + $0x78] sm:$0xff]
    %s332 = scalar_lea.vmem %s2, 3
    %v333 = vld [vmem:[%s332] sm:$0x1]
    %v335 = vlaneseq
    %v336 = vshrl.u32 %v335, 7
    %v337 = vsub.s32 0, %v336
    %v338 = vrot.slane %v333, %v337
    %340 = vmatprep.subr.mxu0 0.0
    %341 = vmatpush1.msra.mxu0 %v316
    %342 = vmatprep.subr.mxu0 0.0
    %343 = vmatpush1.msra.mxu0 %v317
    %344 = vmatprep.subr.mxu0 0.0
    %345 = vmatpush1.msra.mxu0 %v318
    %346 = vmatprep.subr.mxu0 0.0
    %347 = vmatpush1.msra.mxu0 %v319
    %348 = vmatprep.subr.mxu0 0.0
    %349 = vmatpush1.msra.mxu0 %v320
    %350 = vmatprep.subr.mxu0 0.0
    %351 = vmatpush1.msra.mxu0 %v321
    %352 = vmatprep.subr.mxu0 0.0
    %353 = vmatpush1.msra.mxu0 %v322
    %354 = vmatprep.subr.mxu0 0.0
    %355 = vmatpush1.msra.mxu0 %v323
    %356 = vmatprep.subr.mxu0 0.0
    %357 = vmatpush1.msra.mxu0 %v324
    %358 = vmatprep.subr.mxu0 0.0
    %359 = vmatpush1.msra.mxu0 %v325
    %360 = vmatprep.subr.mxu0 0.0
    %361 = vmatpush1.msra.mxu0 %v326
    %362 = vmatprep.subr.mxu0 0.0
    %363 = vmatpush1.msra.mxu0 %v327
    %364 = vmatprep.subr.mxu0 0.0
    %365 = vmatpush1.msra.mxu0 %v328
    %366 = vmatprep.subr.mxu0 0.0
    %367 = vmatpush1.msra.mxu0 %v329
    %368 = vmatprep.subr.mxu0 0.0
    %369 = vmatpush1.msra.mxu0 %v330
    %370 = vmatprep.subr.mxu0 0.0
    %371 = vmatpush1.msra.mxu0 %v331
    %372 = vmatprep.subr.mxu0 0.0
    %373 = vmatpush1.msra.mxu0 0.0
    %374 = vmatprep.subr.mxu0 0.0
    %375 = vmatpush1.msra.mxu0 0.0
    %376 = vmatprep.subr.mxu0 0.0
    %377 = vmatpush1.msra.mxu0 0.0
    %378 = vmatprep.subr.mxu0 0.0
    %379 = vmatpush1.msra.mxu0 0.0
    %380 = vmatprep.subr.mxu0 0.0
    %381 = vmatpush1.msra.mxu0 0.0
    %382 = vmatprep.subr.mxu0 0.0
    %383 = vmatpush1.msra.mxu0 0.0
    %384 = vmatprep.subr.mxu0 0.0
    %385 = vmatpush1.msra.mxu0 0.0
    %386 = vmatprep.subr.mxu0 0.0
    %387 = vmatpush1.msra.mxu0 0.0
    %388 = vmatprep.subr.mxu0 0.0
    %389 = vmatpush1.msra.mxu0 0.0
    %390 = vmatprep.subr.mxu0 0.0
    %391 = vmatpush1.msra.mxu0 0.0
    %392 = vmatprep.subr.mxu0 0.0
    %393 = vmatpush1.msra.mxu0 0.0
    %394 = vmatprep.subr.mxu0 0.0
    %395 = vmatpush1.msra.mxu0 0.0
    %396 = vmatprep.subr.mxu0 0.0
    %397 = vmatpush1.msra.mxu0 0.0
    %398 = vmatprep.subr.mxu0 0.0
    %399 = vmatpush1.msra.mxu0 0.0
    %400 = vmatprep.subr.mxu0 0.0
    %401 = vmatpush1.msra.mxu0 0.0
    %402 = vmatprep.subr.mxu0 0.0
    %403 = vmatpush1.msra.mxu0 0.0
    %404 = vmatprep.mubr.f32.mxu0 0.0
    %405 = vmatmul.mubr.f32.gmra.mrb[0].mxu0 %v314
    %v406 = vpop.f32.mrb[0].mxu0
    %v407 = vadd.f32 %v338, %v406
    %v408 = vpop.f32.mrb[0].mxu0
    %409 = vdwg.mxu0
    %v410 = vmax.f32 %v407, 0.0
    %412 = vrot.lane.b32.xlu0 %v218, 32
    %v413 = vpop.permute.xlu0 %412
    %416 = vrot.lane.b32.xlu0 %v314, 64
    %v417 = vpop.permute.xlu0 %416
    %420 = vrot.lane.b32.xlu0 %v410, 96
    %v421 = vpop.permute.xlu0 %420
    %vm423 = vcmask 261120
    %v424 = vsel %vm423, %v122, %v413
    %vm425 = vcmask 523264
    %v426 = vsel %vm425, %v424, %v417
    %vm427 = vcmask 785408
    %v428 = vsel %vm427, %v426, %v421
    %429 = vst [vmem:[%s3] sm:$0xff] %v428
    %s430 = scalar_lea.vmem [#allocation2], 512
    %v431 = vld [vmem:[%s430] sm:$0xff]
    %v432 = vld [vmem:[%s430 + $0x8] sm:$0xff]
    %v433 = vld [vmem:[%s430 + $0x10] sm:$0xff]
    %v434 = vld [vmem:[%s430 + $0x18] sm:$0xff]
    %v435 = vld [vmem:[%s430 + $0x20] sm:$0xff]
    %v436 = vld [vmem:[%s430 + $0x28] sm:$0xff]
    %v437 = vld [vmem:[%s430 + $0x30] sm:$0xff]
    %v438 = vld [vmem:[%s430 + $0x38] sm:$0xff]
    %v439 = vld [vmem:[%s430 + $0x40] sm:$0xff]
    %v440 = vld [vmem:[%s430 + $0x48] sm:$0xff]
    %v441 = vld [vmem:[%s430 + $0x50] sm:$0xff]
    %v442 = vld [vmem:[%s430 + $0x58] sm:$0xff]
    %v443 = vld [vmem:[%s430 + $0x60] sm:$0xff]
    %v444 = vld [vmem:[%s430 + $0x68] sm:$0xff]
    %v445 = vld [vmem:[%s430 + $0x70] sm:$0xff]
    %v446 = vld [vmem:[%s430 + $0x78] sm:$0xff]
    %s447 = scalar_lea.vmem %s2, 4
    %v448 = vld [vmem:[%s447] sm:$0x1]
    %v450 = vlaneseq
    %v451 = vshrl.u32 %v450, 7
    %v452 = vsub.s32 0, %v451
    %v453 = vrot.slane %v448, %v452
    %455 = vmatprep.subr.mxu0 0.0
    %456 = vmatpush1.msra.mxu0 %v431
    %457 = vmatprep.subr.mxu0 0.0
    %458 = vmatpush1.msra.mxu0 %v432
    %459 = vmatprep.subr.mxu0 0.0
    %460 = vmatpush1.msra.mxu0 %v433
    %461 = vmatprep.subr.mxu0 0.0
    %462 = vmatpush1.msra.mxu0 %v434
    %463 = vmatprep.subr.mxu0 0.0
    %464 = vmatpush1.msra.mxu0 %v435
    %465 = vmatprep.subr.mxu0 0.0
    %466 = vmatpush1.msra.mxu0 %v436
    %467 = vmatprep.subr.mxu0 0.0
    %468 = vmatpush1.msra.mxu0 %v437
    %469 = vmatprep.subr.mxu0 0.0
    %470 = vmatpush1.msra.mxu0 %v438
    %471 = vmatprep.subr.mxu0 0.0
    %472 = vmatpush1.msra.mxu0 %v439
    %473 = vmatprep.subr.mxu0 0.0
    %474 = vmatpush1.msra.mxu0 %v440
    %475 = vmatprep.subr.mxu0 0.0
    %476 = vmatpush1.msra.mxu0 %v441
    %477 = vmatprep.subr.mxu0 0.0
    %478 = vmatpush1.msra.mxu0 %v442
    %479 = vmatprep.subr.mxu0 0.0
    %480 = vmatpush1.msra.mxu0 %v443
    %481 = vmatprep.subr.mxu0 0.0
    %482 = vmatpush1.msra.mxu0 %v444
    %483 = vmatprep.subr.mxu0 0.0
    %484 = vmatpush1.msra.mxu0 %v445
    %485 = vmatprep.subr.mxu0 0.0
    %486 = vmatpush1.msra.mxu0 %v446
    %487 = vmatprep.subr.mxu0 0.0
    %488 = vmatpush1.msra.mxu0 0.0
    %489 = vmatprep.subr.mxu0 0.0
    %490 = vmatpush1.msra.mxu0 0.0
    %491 = vmatprep.subr.mxu0 0.0
    %492 = vmatpush1.msra.mxu0 0.0
    %493 = vmatprep.subr.mxu0 0.0
    %494 = vmatpush1.msra.mxu0 0.0
    %495 = vmatprep.subr.mxu0 0.0
    %496 = vmatpush1.msra.mxu0 0.0
    %497 = vmatprep.subr.mxu0 0.0
    %498 = vmatpush1.msra.mxu0 0.0
    %499 = vmatprep.subr.mxu0 0.0
    %500 = vmatpush1.msra.mxu0 0.0
    %501 = vmatprep.subr.mxu0 0.0
    %502 = vmatpush1.msra.mxu0 0.0
    %503 = vmatprep.subr.mxu0 0.0
    %504 = vmatpush1.msra.mxu0 0.0
    %505 = vmatprep.subr.mxu0 0.0
    %506 = vmatpush1.msra.mxu0 0.0
    %507 = vmatprep.subr.mxu0 0.0
    %508 = vmatpush1.msra.mxu0 0.0
    %509 = vmatprep.subr.mxu0 0.0
    %510 = vmatpush1.msra.mxu0 0.0
    %511 = vmatprep.subr.mxu0 0.0
    %512 = vmatpush1.msra.mxu0 0.0
    %513 = vmatprep.subr.mxu0 0.0
    %514 = vmatpush1.msra.mxu0 0.0
    %515 = vmatprep.subr.mxu0 0.0
    %516 = vmatpush1.msra.mxu0 0.0
    %517 = vmatprep.subr.mxu0 0.0
    %518 = vmatpush1.msra.mxu0 0.0
    %519 = vmatprep.mubr.f32.mxu0 0.0
    %520 = vmatmul.mubr.f32.gmra.mrb[0].mxu0 %v410
    %v521 = vpop.f32.mrb[0].mxu0
    %v522 = vadd.f32 %v453, %v521
    %v523 = vpop.f32.mrb[0].mxu0
    %524 = vdwg.mxu0
    %v525 = vmax.f32 %v522, 0.0
    %s526 = scalar_lea.vmem [#allocation2], 640
    %v527 = vld [vmem:[%s526] sm:$0xff]
    %v528 = vld [vmem:[%s526 + $0x8] sm:$0xff]
    %v529 = vld [vmem:[%s526 + $0x10] sm:$0xff]
    %v530 = vld [vmem:[%s526 + $0x18] sm:$0xff]
    %v531 = vld [vmem:[%s526 + $0x20] sm:$0xff]
    %v532 = vld [vmem:[%s526 + $0x28] sm:$0xff]
    %v533 = vld [vmem:[%s526 + $0x30] sm:$0xff]
    %v534 = vld [vmem:[%s526 + $0x38] sm:$0xff]
    %v535 = vld [vmem:[%s526 + $0x40] sm:$0xff]
    %v536 = vld [vmem:[%s526 + $0x48] sm:$0xff]
    %v537 = vld [vmem:[%s526 + $0x50] sm:$0xff]
    %v538 = vld [vmem:[%s526 + $0x58] sm:$0xff]
    %v539 = vld [vmem:[%s526 + $0x60] sm:$0xff]
    %v540 = vld [vmem:[%s526 + $0x68] sm:$0xff]
    %v541 = vld [vmem:[%s526 + $0x70] sm:$0xff]
    %v542 = vld [vmem:[%s526 + $0x78] sm:$0xff]
    %s543 = scalar_lea.vmem %s2, 5
    %v544 = vld [vmem:[%s543] sm:$0x1]
    %v546 = vlaneseq
    %v547 = vshrl.u32 %v546, 7
    %v548 = vsub.s32 0, %v547
    %v549 = vrot.slane %v544, %v548
    %551 = vmatprep.subr.mxu0 0.0
    %552 = vmatpush1.msra.mxu0 %v527
    %553 = vmatprep.subr.mxu0 0.0
    %554 = vmatpush1.msra.mxu0 %v528
    %555 = vmatprep.subr.mxu0 0.0
    %556 = vmatpush1.msra.mxu0 %v529
    %557 = vmatprep.subr.mxu0 0.0
    %558 = vmatpush1.msra.mxu0 %v530
    %559 = vmatprep.subr.mxu0 0.0
    %560 = vmatpush1.msra.mxu0 %v531
    %561 = vmatprep.subr.mxu0 0.0
    %562 = vmatpush1.msra.mxu0 %v532
    %563 = vmatprep.subr.mxu0 0.0
    %564 = vmatpush1.msra.mxu0 %v533
    %565 = vmatprep.subr.mxu0 0.0
    %566 = vmatpush1.msra.mxu0 %v534
    %567 = vmatprep.subr.mxu0 0.0
    %568 = vmatpush1.msra.mxu0 %v535
    %569 = vmatprep.subr.mxu0 0.0
    %570 = vmatpush1.msra.mxu0 %v536
    %571 = vmatprep.subr.mxu0 0.0
    %572 = vmatpush1.msra.mxu0 %v537
    %573 = vmatprep.subr.mxu0 0.0
    %574 = vmatpush1.msra.mxu0 %v538
    %575 = vmatprep.subr.mxu0 0.0
    %576 = vmatpush1.msra.mxu0 %v539
    %577 = vmatprep.subr.mxu0 0.0
    %578 = vmatpush1.msra.mxu0 %v540
    %579 = vmatprep.subr.mxu0 0.0
    %580 = vmatpush1.msra.mxu0 %v541
    %581 = vmatprep.subr.mxu0 0.0
    %582 = vmatpush1.msra.mxu0 %v542
    %583 = vmatprep.subr.mxu0 0.0
    %584 = vmatpush1.msra.mxu0 0.0
    %585 = vmatprep.subr.mxu0 0.0
    %586 = vmatpush1.msra.mxu0 0.0
    %587 = vmatprep.subr.mxu0 0.0
    %588 = vmatpush1.msra.mxu0 0.0
    %589 = vmatprep.subr.mxu0 0.0
    %590 = vmatpush1.msra.mxu0 0.0
    %591 = vmatprep.subr.mxu0 0.0
    %592 = vmatpush1.msra.mxu0 0.0
    %593 = vmatprep.subr.mxu0 0.0
    %594 = vmatpush1.msra.mxu0 0.0
    %595 = vmatprep.subr.mxu0 0.0
    %596 = vmatpush1.msra.mxu0 0.0
    %597 = vmatprep.subr.mxu0 0.0
    %598 = vmatpush1.msra.mxu0 0.0
    %599 = vmatprep.subr.mxu0 0.0
    %600 = vmatpush1.msra.mxu0 0.0
    %601 = vmatprep.subr.mxu0 0.0
    %602 = vmatpush1.msra.mxu0 0.0
    %603 = vmatprep.subr.mxu0 0.0
    %604 = vmatpush1.msra.mxu0 0.0
    %605 = vmatprep.subr.mxu0 0.0
    %606 = vmatpush1.msra.mxu0 0.0
    %607 = vmatprep.subr.mxu0 0.0
    %608 = vmatpush1.msra.mxu0 0.0
    %609 = vmatprep.subr.mxu0 0.0
    %610 = vmatpush1.msra.mxu0 0.0
    %611 = vmatprep.subr.mxu0 0.0
    %612 = vmatpush1.msra.mxu0 0.0
    %613 = vmatprep.subr.mxu0 0.0
    %614 = vmatpush1.msra.mxu0 0.0
    %615 = vmatprep.mubr.f32.mxu0 0.0
    %616 = vmatmul.mubr.f32.gmra.mrb[0].mxu0 %v525
    %v617 = vpop.f32.mrb[0].mxu0
    %v618 = vadd.f32 %v549, %v617
    %v619 = vpop.f32.mrb[0].mxu0
    %620 = vdwg.mxu0
    %v621 = vmax.f32 %v618, 0.0
    %s622 = scalar_lea.vmem [#allocation2], 768
    %v623 = vld [vmem:[%s622] sm:$0xff]
    %v624 = vld [vmem:[%s622 + $0x8] sm:$0xff]
    %v625 = vld [vmem:[%s622 + $0x10] sm:$0xff]
    %v626 = vld [vmem:[%s622 + $0x18] sm:$0xff]
    %v627 = vld [vmem:[%s622 + $0x20] sm:$0xff]
    %v628 = vld [vmem:[%s622 + $0x28] sm:$0xff]
    %v629 = vld [vmem:[%s622 + $0x30] sm:$0xff]
    %v630 = vld [vmem:[%s622 + $0x38] sm:$0xff]
    %v631 = vld [vmem:[%s622 + $0x40] sm:$0xff]
    %v632 = vld [vmem:[%s622 + $0x48] sm:$0xff]
    %v633 = vld [vmem:[%s622 + $0x50] sm:$0xff]
    %v634 = vld [vmem:[%s622 + $0x58] sm:$0xff]
    %v635 = vld [vmem:[%s622 + $0x60] sm:$0xff]
    %v636 = vld [vmem:[%s622 + $0x68] sm:$0xff]
    %v637 = vld [vmem:[%s622 + $0x70] sm:$0xff]
    %v638 = vld [vmem:[%s622 + $0x78] sm:$0xff]
    %s639 = scalar_lea.vmem %s2, 6
    %v640 = vld [vmem:[%s639] sm:$0x1]
    %v642 = vlaneseq
    %v643 = vshrl.u32 %v642, 7
    %v644 = vsub.s32 0, %v643
    %v645 = vrot.slane %v640, %v644
    %647 = vmatprep.subr.mxu0 0.0
    %648 = vmatpush1.msra.mxu0 %v623
    %649 = vmatprep.subr.mxu0 0.0
    %650 = vmatpush1.msra.mxu0 %v624
    %651 = vmatprep.subr.mxu0 0.0
    %652 = vmatpush1.msra.mxu0 %v625
    %653 = vmatprep.subr.mxu0 0.0
    %654 = vmatpush1.msra.mxu0 %v626
    %655 = vmatprep.subr.mxu0 0.0
    %656 = vmatpush1.msra.mxu0 %v627
    %657 = vmatprep.subr.mxu0 0.0
    %658 = vmatpush1.msra.mxu0 %v628
    %659 = vmatprep.subr.mxu0 0.0
    %660 = vmatpush1.msra.mxu0 %v629
    %661 = vmatprep.subr.mxu0 0.0
    %662 = vmatpush1.msra.mxu0 %v630
    %663 = vmatprep.subr.mxu0 0.0
    %664 = vmatpush1.msra.mxu0 %v631
    %665 = vmatprep.subr.mxu0 0.0
    %666 = vmatpush1.msra.mxu0 %v632
    %667 = vmatprep.subr.mxu0 0.0
    %668 = vmatpush1.msra.mxu0 %v633
    %669 = vmatprep.subr.mxu0 0.0
    %670 = vmatpush1.msra.mxu0 %v634
    %671 = vmatprep.subr.mxu0 0.0
    %672 = vmatpush1.msra.mxu0 %v635
    %673 = vmatprep.subr.mxu0 0.0
    %674 = vmatpush1.msra.mxu0 %v636
    %675 = vmatprep.subr.mxu0 0.0
    %676 = vmatpush1.msra.mxu0 %v637
    %677 = vmatprep.subr.mxu0 0.0
    %678 = vmatpush1.msra.mxu0 %v638
    %679 = vmatprep.subr.mxu0 0.0
    %680 = vmatpush1.msra.mxu0 0.0
    %681 = vmatprep.subr.mxu0 0.0
    %682 = vmatpush1.msra.mxu0 0.0
    %683 = vmatprep.subr.mxu0 0.0
    %684 = vmatpush1.msra.mxu0 0.0
    %685 = vmatprep.subr.mxu0 0.0
    %686 = vmatpush1.msra.mxu0 0.0
    %687 = vmatprep.subr.mxu0 0.0
    %688 = vmatpush1.msra.mxu0 0.0
    %689 = vmatprep.subr.mxu0 0.0
    %690 = vmatpush1.msra.mxu0 0.0
    %691 = vmatprep.subr.mxu0 0.0
    %692 = vmatpush1.msra.mxu0 0.0
    %693 = vmatprep.subr.mxu0 0.0
    %694 = vmatpush1.msra.mxu0 0.0
    %695 = vmatprep.subr.mxu0 0.0
    %696 = vmatpush1.msra.mxu0 0.0
    %697 = vmatprep.subr.mxu0 0.0
    %698 = vmatpush1.msra.mxu0 0.0
    %699 = vmatprep.subr.mxu0 0.0
    %700 = vmatpush1.msra.mxu0 0.0
    %701 = vmatprep.subr.mxu0 0.0
    %702 = vmatpush1.msra.mxu0 0.0
    %703 = vmatprep.subr.mxu0 0.0
    %704 = vmatpush1.msra.mxu0 0.0
    %705 = vmatprep.subr.mxu0 0.0
    %706 = vmatpush1.msra.mxu0 0.0
    %707 = vmatprep.subr.mxu0 0.0
    %708 = vmatpush1.msra.mxu0 0.0
    %709 = vmatprep.subr.mxu0 0.0
    %710 = vmatpush1.msra.mxu0 0.0
    %711 = vmatprep.mubr.f32.mxu0 0.0
    %712 = vmatmul.mubr.f32.gmra.mrb[0].mxu0 %v621
    %v713 = vpop.f32.mrb[0].mxu0
    %v714 = vadd.f32 %v645, %v713
    %v715 = vpop.f32.mrb[0].mxu0
    %716 = vdwg.mxu0
    %v717 = vmax.f32 %v714, 0.0
    %s718 = scalar_lea.vmem [#allocation2], 896
    %v719 = vld [vmem:[%s718] sm:$0xff]
    %v720 = vld [vmem:[%s718 + $0x8] sm:$0xff]
    %v721 = vld [vmem:[%s718 + $0x10] sm:$0xff]
    %v722 = vld [vmem:[%s718 + $0x18] sm:$0xff]
    %v723 = vld [vmem:[%s718 + $0x20] sm:$0xff]
    %v724 = vld [vmem:[%s718 + $0x28] sm:$0xff]
    %v725 = vld [vmem:[%s718 + $0x30] sm:$0xff]
    %v726 = vld [vmem:[%s718 + $0x38] sm:$0xff]
    %v727 = vld [vmem:[%s718 + $0x40] sm:$0xff]
    %v728 = vld [vmem:[%s718 + $0x48] sm:$0xff]
    %v729 = vld [vmem:[%s718 + $0x50] sm:$0xff]
    %v730 = vld [vmem:[%s718 + $0x58] sm:$0xff]
    %v731 = vld [vmem:[%s718 + $0x60] sm:$0xff]
    %v732 = vld [vmem:[%s718 + $0x68] sm:$0xff]
    %v733 = vld [vmem:[%s718 + $0x70] sm:$0xff]
    %v734 = vld [vmem:[%s718 + $0x78] sm:$0xff]
    %s735 = scalar_lea.vmem %s2, 7
    %v736 = vld [vmem:[%s735] sm:$0x1]
    %v738 = vlaneseq
    %v739 = vshrl.u32 %v738, 7
    %v740 = vsub.s32 0, %v739
    %v741 = vrot.slane %v736, %v740
    %743 = vmatprep.subr.mxu0 0.0
    %744 = vmatpush1.msra.mxu0 %v719
    %745 = vmatprep.subr.mxu0 0.0
    %746 = vmatpush1.msra.mxu0 %v720
    %747 = vmatprep.subr.mxu0 0.0
    %748 = vmatpush1.msra.mxu0 %v721
    %749 = vmatprep.subr.mxu0 0.0
    %750 = vmatpush1.msra.mxu0 %v722
    %751 = vmatprep.subr.mxu0 0.0
    %752 = vmatpush1.msra.mxu0 %v723
    %753 = vmatprep.subr.mxu0 0.0
    %754 = vmatpush1.msra.mxu0 %v724
    %755 = vmatprep.subr.mxu0 0.0
    %756 = vmatpush1.msra.mxu0 %v725
    %757 = vmatprep.subr.mxu0 0.0
    %758 = vmatpush1.msra.mxu0 %v726
    %759 = vmatprep.subr.mxu0 0.0
    %760 = vmatpush1.msra.mxu0 %v727
    %761 = vmatprep.subr.mxu0 0.0
    %762 = vmatpush1.msra.mxu0 %v728
    %763 = vmatprep.subr.mxu0 0.0
    %764 = vmatpush1.msra.mxu0 %v729
    %765 = vmatprep.subr.mxu0 0.0
    %766 = vmatpush1.msra.mxu0 %v730
    %767 = vmatprep.subr.mxu0 0.0
    %768 = vmatpush1.msra.mxu0 %v731
    %769 = vmatprep.subr.mxu0 0.0
    %770 = vmatpush1.msra.mxu0 %v732
    %771 = vmatprep.subr.mxu0 0.0
    %772 = vmatpush1.msra.mxu0 %v733
    %773 = vmatprep.subr.mxu0 0.0
    %774 = vmatpush1.msra.mxu0 %v734
    %775 = vmatprep.subr.mxu0 0.0
    %776 = vmatpush1.msra.mxu0 0.0
    %777 = vmatprep.subr.mxu0 0.0
    %778 = vmatpush1.msra.mxu0 0.0
    %779 = vmatprep.subr.mxu0 0.0
    %780 = vmatpush1.msra.mxu0 0.0
    %781 = vmatprep.subr.mxu0 0.0
    %782 = vmatpush1.msra.mxu0 0.0
    %783 = vmatprep.subr.mxu0 0.0
    %784 = vmatpush1.msra.mxu0 0.0
    %785 = vmatprep.subr.mxu0 0.0
    %786 = vmatpush1.msra.mxu0 0.0
    %787 = vmatprep.subr.mxu0 0.0
    %788 = vmatpush1.msra.mxu0 0.0
    %789 = vmatprep.subr.mxu0 0.0
    %790 = vmatpush1.msra.mxu0 0.0
    %791 = vmatprep.subr.mxu0 0.0
    %792 = vmatpush1.msra.mxu0 0.0
    %793 = vmatprep.subr.mxu0 0.0
    %794 = vmatpush1.msra.mxu0 0.0
    %795 = vmatprep.subr.mxu0 0.0
    %796 = vmatpush1.msra.mxu0 0.0
    %797 = vmatprep.subr.mxu0 0.0
    %798 = vmatpush1.msra.mxu0 0.0
    %799 = vmatprep.subr.mxu0 0.0
    %800 = vmatpush1.msra.mxu0 0.0
    %801 = vmatprep.subr.mxu0 0.0
    %802 = vmatpush1.msra.mxu0 0.0
    %803 = vmatprep.subr.mxu0 0.0
    %804 = vmatpush1.msra.mxu0 0.0
    %805 = vmatprep.subr.mxu0 0.0
    %806 = vmatpush1.msra.mxu0 0.0
    %807 = vmatprep.mubr.f32.mxu0 0.0
    %808 = vmatmul.mubr.f32.gmra.mrb[0].mxu0 %v717
    %v809 = vpop.f32.mrb[0].mxu0
    %v810 = vadd.f32 %v741, %v809
    %v811 = vpop.f32.mrb[0].mxu0
    %812 = vdwg.mxu0
    %v813 = vmax.f32 %v810, 0.0
    %815 = vrot.lane.b32.xlu0 %v621, 32
    %v816 = vpop.permute.xlu0 %815
    %819 = vrot.lane.b32.xlu0 %v717, 64
    %v820 = vpop.permute.xlu0 %819
    %823 = vrot.lane.b32.xlu0 %v813, 96
    %v824 = vpop.permute.xlu0 %823
    %v826 = vsel %vm423, %v525, %v816
    %v827 = vsel %vm425, %v826, %v820
    %v828 = vsel %vm427, %v827, %v824
    %829 = vst [vmem:[%s3 + $0x8] sm:$0xff] %v828
    %s830 = scalar_lea.vmem [#allocation2], 1024
    %v831 = vld [vmem:[%s830] sm:$0xff]
    %v832 = vld [vmem:[%s830 + $0x8] sm:$0xff]
    %v833 = vld [vmem:[%s830 + $0x10] sm:$0xff]
    %v834 = vld [vmem:[%s830 + $0x18] sm:$0xff]
    %v835 = vld [vmem:[%s830 + $0x20] sm:$0xff]
    %v836 = vld [vmem:[%s830 + $0x28] sm:$0xff]
    %v837 = vld [vmem:[%s830 + $0x30] sm:$0xff]
    %v838 = vld [vmem:[%s830 + $0x38] sm:$0xff]
    %v839 = vld [vmem:[%s830 + $0x40] sm:$0xff]
    %v840 = vld [vmem:[%s830 + $0x48] sm:$0xff]
    %v841 = vld [vmem:[%s830 + $0x50] sm:$0xff]
    %v842 = vld [vmem:[%s830 + $0x58] sm:$0xff]
    %v843 = vld [vmem:[%s830 + $0x60] sm:$0xff]
    %v844 = vld [vmem:[%s830 + $0x68] sm:$0xff]
    %v845 = vld [vmem:[%s830 + $0x70] sm:$0xff]
    %v846 = vld [vmem:[%s830 + $0x78] sm:$0xff]
    %s847 = scalar_lea.vmem %s2, 8
    %v848 = vld [vmem:[%s847] sm:$0x1]
    %v850 = vlaneseq
    %v851 = vshrl.u32 %v850, 7
    %v852 = vsub.s32 0, %v851
    %v853 = vrot.slane %v848, %v852
    %855 = vmatprep.subr.mxu0 0.0
    %856 = vmatpush1.msra.mxu0 %v831
    %857 = vmatprep.subr.mxu0 0.0
    %858 = vmatpush1.msra.mxu0 %v832
    %859 = vmatprep.subr.mxu0 0.0
    %860 = vmatpush1.msra.mxu0 %v833
    %861 = vmatprep.subr.mxu0 0.0
    %862 = vmatpush1.msra.mxu0 %v834
    %863 = vmatprep.subr.mxu0 0.0
    %864 = vmatpush1.msra.mxu0 %v835
    %865 = vmatprep.subr.mxu0 0.0
    %866 = vmatpush1.msra.mxu0 %v836
    %867 = vmatprep.subr.mxu0 0.0
    %868 = vmatpush1.msra.mxu0 %v837
    %869 = vmatprep.subr.mxu0 0.0
    %870 = vmatpush1.msra.mxu0 %v838
    %871 = vmatprep.subr.mxu0 0.0
    %872 = vmatpush1.msra.mxu0 %v839
    %873 = vmatprep.subr.mxu0 0.0
    %874 = vmatpush1.msra.mxu0 %v840
    %875 = vmatprep.subr.mxu0 0.0
    %876 = vmatpush1.msra.mxu0 %v841
    %877 = vmatprep.subr.mxu0 0.0
    %878 = vmatpush1.msra.mxu0 %v842
    %879 = vmatprep.subr.mxu0 0.0
    %880 = vmatpush1.msra.mxu0 %v843
    %881 = vmatprep.subr.mxu0 0.0
    %882 = vmatpush1.msra.mxu0 %v844
    %883 = vmatprep.subr.mxu0 0.0
    %884 = vmatpush1.msra.mxu0 %v845
    %885 = vmatprep.subr.mxu0 0.0
    %886 = vmatpush1.msra.mxu0 %v846
    %887 = vmatprep.subr.mxu0 0.0
    %888 = vmatpush1.msra.mxu0 0.0
    %889 = vmatprep.subr.mxu0 0.0
    %890 = vmatpush1.msra.mxu0 0.0
    %891 = vmatprep.subr.mxu0 0.0
    %892 = vmatpush1.msra.mxu0 0.0
    %893 = vmatprep.subr.mxu0 0.0
    %894 = vmatpush1.msra.mxu0 0.0
    %895 = vmatprep.subr.mxu0 0.0
    %896 = vmatpush1.msra.mxu0 0.0
    %897 = vmatprep.subr.mxu0 0.0
    %898 = vmatpush1.msra.mxu0 0.0
    %899 = vmatprep.subr.mxu0 0.0
    %900 = vmatpush1.msra.mxu0 0.0
    %901 = vmatprep.subr.mxu0 0.0
    %902 = vmatpush1.msra.mxu0 0.0
    %903 = vmatprep.subr.mxu0 0.0
    %904 = vmatpush1.msra.mxu0 0.0
    %905 = vmatprep.subr.mxu0 0.0
    %906 = vmatpush1.msra.mxu0 0.0
    %907 = vmatprep.subr.mxu0 0.0
    %908 = vmatpush1.msra.mxu0 0.0
    %909 = vmatprep.subr.mxu0 0.0
    %910 = vmatpush1.msra.mxu0 0.0
    %911 = vmatprep.subr.mxu0 0.0
    %912 = vmatpush1.msra.mxu0 0.0
    %913 = vmatprep.subr.mxu0 0.0
    %914 = vmatpush1.msra.mxu0 0.0
    %915 = vmatprep.subr.mxu0 0.0
    %916 = vmatpush1.msra.mxu0 0.0
    %917 = vmatprep.subr.mxu0 0.0
    %918 = vmatpush1.msra.mxu0 0.0
    %919 = vmatprep.mubr.f32.mxu0 0.0
    %920 = vmatmul.mubr.f32.gmra.mrb[0].mxu0 %v813
    %v921 = vpop.f32.mrb[0].mxu0
    %v922 = vadd.f32 %v853, %v921
    %v923 = vpop.f32.mrb[0].mxu0
    %924 = vdwg.mxu0
    %v925 = vmax.f32 %v922, 0.0
    %s926 = scalar_lea.vmem [#allocation2], 1152
    %v927 = vld [vmem:[%s926] sm:$0xff]
    %v928 = vld [vmem:[%s926 + $0x8] sm:$0xff]
    %v929 = vld [vmem:[%s926 + $0x10] sm:$0xff]
    %v930 = vld [vmem:[%s926 + $0x18] sm:$0xff]
    %v931 = vld [vmem:[%s926 + $0x20] sm:$0xff]
    %v932 = vld [vmem:[%s926 + $0x28] sm:$0xff]
    %v933 = vld [vmem:[%s926 + $0x30] sm:$0xff]
    %v934 = vld [vmem:[%s926 + $0x38] sm:$0xff]
    %v935 = vld [vmem:[%s926 + $0x40] sm:$0xff]
    %v936 = vld [vmem:[%s926 + $0x48] sm:$0xff]
    %v937 = vld [vmem:[%s926 + $0x50] sm:$0xff]
    %v938 = vld [vmem:[%s926 + $0x58] sm:$0xff]
    %v939 = vld [vmem:[%s926 + $0x60] sm:$0xff]
    %v940 = vld [vmem:[%s926 + $0x68] sm:$0xff]
    %v941 = vld [vmem:[%s926 + $0x70] sm:$0xff]
    %v942 = vld [vmem:[%s926 + $0x78] sm:$0xff]
    %s943 = scalar_lea.vmem %s2, 9
    %v944 = vld [vmem:[%s943] sm:$0x1]
    %v946 = vlaneseq
    %v947 = vshrl.u32 %v946, 7
    %v948 = vsub.s32 0, %v947
    %v949 = vrot.slane %v944, %v948
    %951 = vmatprep.subr.mxu0 0.0
    %952 = vmatpush1.msra.mxu0 %v927
    %953 = vmatprep.subr.mxu0 0.0
    %954 = vmatpush1.msra.mxu0 %v928
    %955 = vmatprep.subr.mxu0 0.0
    %956 = vmatpush1.msra.mxu0 %v929
    %957 = vmatprep.subr.mxu0 0.0
    %958 = vmatpush1.msra.mxu0 %v930
    %959 = vmatprep.subr.mxu0 0.0
    %960 = vmatpush1.msra.mxu0 %v931
    %961 = vmatprep.subr.mxu0 0.0
    %962 = vmatpush1.msra.mxu0 %v932
    %963 = vmatprep.subr.mxu0 0.0
    %964 = vmatpush1.msra.mxu0 %v933
    %965 = vmatprep.subr.mxu0 0.0
    %966 = vmatpush1.msra.mxu0 %v934
    %967 = vmatprep.subr.mxu0 0.0
    %968 = vmatpush1.msra.mxu0 %v935
    %969 = vmatprep.subr.mxu0 0.0
    %970 = vmatpush1.msra.mxu0 %v936
    %971 = vmatprep.subr.mxu0 0.0
    %972 = vmatpush1.msra.mxu0 %v937
    %973 = vmatprep.subr.mxu0 0.0
    %974 = vmatpush1.msra.mxu0 %v938
    %975 = vmatprep.subr.mxu0 0.0
    %976 = vmatpush1.msra.mxu0 %v939
    %977 = vmatprep.subr.mxu0 0.0
    %978 = vmatpush1.msra.mxu0 %v940
    %979 = vmatprep.subr.mxu0 0.0
    %980 = vmatpush1.msra.mxu0 %v941
    %981 = vmatprep.subr.mxu0 0.0
    %982 = vmatpush1.msra.mxu0 %v942
    %983 = vmatprep.subr.mxu0 0.0
    %984 = vmatpush1.msra.mxu0 0.0
    %985 = vmatprep.subr.mxu0 0.0
    %986 = vmatpush1.msra.mxu0 0.0
    %987 = vmatprep.subr.mxu0 0.0
    %988 = vmatpush1.msra.mxu0 0.0
    %989 = vmatprep.subr.mxu0 0.0
    %990 = vmatpush1.msra.mxu0 0.0
    %991 = vmatprep.subr.mxu0 0.0
    %992 = vmatpush1.msra.mxu0 0.0
    %993 = vmatprep.subr.mxu0 0.0
    %994 = vmatpush1.msra.mxu0 0.0
    %995 = vmatprep.subr.mxu0 0.0
    %996 = vmatpush1.msra.mxu0 0.0
    %997 = vmatprep.subr.mxu0 0.0
    %998 = vmatpush1.msra.mxu0 0.0
    %999 = vmatprep.subr.mxu0 0.0
    %1000 = vmatpush1.msra.mxu0 0.0
    %1001 = vmatprep.subr.mxu0 0.0
    %1002 = vmatpush1.msra.mxu0 0.0
    %1003 = vmatprep.subr.mxu0 0.0
    %1004 = vmatpush1.msra.mxu0 0.0
    %1005 = vmatprep.subr.mxu0 0.0
    %1006 = vmatpush1.msra.mxu0 0.0
    %1007 = vmatprep.subr.mxu0 0.0
    %1008 = vmatpush1.msra.mxu0 0.0
    %1009 = vmatprep.subr.mxu0 0.0
    %1010 = vmatpush1.msra.mxu0 0.0
    %1011 = vmatprep.subr.mxu0 0.0
    %1012 = vmatpush1.msra.mxu0 0.0
    %1013 = vmatprep.subr.mxu0 0.0
    %1014 = vmatpush1.msra.mxu0 0.0
    %1015 = vmatprep.mubr.f32.mxu0 0.0
    %1016 = vmatmul.mubr.f32.gmra.mrb[0].mxu0 %v925
    %v1017 = vpop.f32.mrb[0].mxu0
    %v1018 = vadd.f32 %v949, %v1017
    %v1019 = vpop.f32.mrb[0].mxu0
    %1020 = vdwg.mxu0
    %v1021 = vxor.u32 %v1018, 2147483648
    %v1022 = vmul.f32 %v1021, 1.442695
    %v1023 = vpow.pop %v1022
    %v1024 = vadd.f32 %v1023, 1.0
    %v1025 = vrcp.pop %v1024
    %v1026 = vmul.f32 1.0, %v1025
    %1028 = vrot.lane.b32.xlu0 %v1026, 32
    %v1029 = vpop.permute.xlu0 %1028
    %v1031 = vsel %vm423, %v925, %v1029
    %vm1032 = vcmask 326656
    %v1033 = vsel %vm1032, %v1031, 0.0
    %1034 = vst [vmem:[%s3 + $0x10] sm:$0xff] %v1033
    // Predicated region
    $region18: #{mlp10_forward.1} parent=1 // pred_check
      _
    $region19: #{mlp10_forward.1} parent=1 // pred_check_branch
      %1036 = sbr.rel (0) target = $region21
    $region20: #{mlp10_forward.1} parent=1 // pred_region
      _
    $region21: #{mlp10_forward.1} parent=1 // pred_fallthru
      _
    // Predicated region
    $region22: #{mlp10_forward.1} parent=1 // pred_check
      _
    $region23: #{mlp10_forward.1} parent=1 // pred_check_branch
      %1038 = sbr.rel (0) target = $region25
    $region24: #{mlp10_forward.1} parent=1 // pred_region
      _
    $region25: #{mlp10_forward.1} parent=1 // pred_fallthru
      _
    %1039 = vsyncpa [#allocation3], 1

</llo_original>
